<compile_context>
chip_gen: v7x
topology: tpu7x:2x2x1
jax: 0.10.0
libtpu: 0.0.40
codegen_flags: <defaults>
</compile_context>

<pallas_src>
import functools
import math

import jax
import jax.numpy as jnp
from jax.experimental import pallas as pl
from jax.experimental.pallas import tpu as pltpu


def _tile(dim, target, align):
    """Largest tile <= target that is a multiple of `align` and divides `dim`.

    Falls back to the full extent (always a legal block) for ragged dims.
    With per-(batch, head) blocking the fallback is bounded by S or d_model,
    so it cannot blow up to a full B*S accumulator.
    """
    if dim <= target:
        return dim
    t = (target // align) * align
    while t >= align:
        if dim % t == 0:
            return t
        t -= align
    return dim  # TODO(synk): pad ragged dims instead of full-extent fallback.


def _vmem_limit(block_bytes, scratch_bytes=0):
    """Scoped-VMEM budget: double-buffered blocks + scratch + margin."""
    est = 2 * block_bytes + scratch_bytes + (4 << 20)
    return int(min(max(est, 32 << 20), 100 << 20))


# ----------------------------------------------------------------------------
# Fused QKV projection, head-major output: qkv[g,b,h,s,:] = x[g,b,s,:]@W[g,h]+b
# ----------------------------------------------------------------------------
def _qkv_proj_kernel(x_ref, w_ref, b_ref, o_ref, acc_ref):
    kk = pl.program_id(4)

    @pl.when(kk == 0)
    def _init():
        acc_ref[...] = jnp.zeros_like(acc_ref)

    # bf16 x bf16 -> f32 accumulate on the MXU; weights are pre-transposed and
    # pre-split per head, so there is no in-kernel transpose or lane slice.
    acc_ref[...] += jnp.dot(x_ref[0, 0], w_ref[0, 0],
                            preferred_element_type=jnp.float32)

    @pl.when(kk == pl.num_programs(4) - 1)
    def _finalize():
        o_ref[0, 0, 0] = (acc_ref[...] + b_ref[0, 0]).astype(o_ref.dtype)


def qkv_head_projection(x, w, b, *, ts_target=512, tk_target=512):
    """x: (Gin, B, S, D) bf16 with Gin in {1, 3}; w: (3, H, D, d_k) bf16;
    b: (3, H, 1, d_k) f32.  Returns (3, B, H, S, d_k) bf16."""
    gin, B, S, D = x.shape
    _, H, _, d_k = w.shape
    ts = _tile(S, ts_target, 8)
    tk = _tile(D, tk_target, 128)
    grid = (3, B, S // ts, H, D // tk)

    if gin == 1:   # self-attention: reuse the single input for q, k and v
        x_map = lambda g, b_, i, h, k: (0, b_, i, k)
    else:
        x_map = lambda g, b_, i, h, k: (g, b_, i, k)

    block_bytes = ts * tk * 2 + tk * d_k * 2 + d_k * 4 + ts * d_k * 2
    return pl.pallas_call(
        _qkv_proj_kernel,
        grid=grid,
        in_specs=[
            pl.BlockSpec((1, 1, ts, tk), x_map),
            pl.BlockSpec((1, 1, tk, d_k), lambda g, b_, i, h, k: (g, h, k, 0)),
            pl.BlockSpec((1, 1, 1, d_k), lambda g, b_, i, h, k: (g, h, 0, 0)),
        ],
        out_specs=pl.BlockSpec((1, 1, 1, ts, d_k),
                               lambda g, b_, i, h, k: (g, b_, h, i, 0)),
        out_shape=jax.ShapeDtypeStruct((3, B, H, S, d_k), jnp.bfloat16),
        scratch_shapes=[pltpu.VMEM((ts, d_k), jnp.float32)],
        compiler_params=pltpu.CompilerParams(
            dimension_semantics=("parallel", "parallel", "parallel",
                                 "parallel", "arbitrary"),
            vmem_limit_bytes=_vmem_limit(block_bytes, ts * d_k * 4)),
    )(x, w, b)


# ----------------------------------------------------------------------------
# Attention: grid over (batch, head, query-tile); full-S keys per step.
# ----------------------------------------------------------------------------
def _attn_kernel(qkv_ref, mask_ref, o_ref, p_ref, *, tq):
    qi = pl.program_id(2)
    q0 = pl.multiple_of(qi * tq, tq)
    q = qkv_ref[0, 0, 0, pl.ds(q0, tq), :]      # (tq, d_k); 1/sqrt(d_k) folded into W_q
    k = qkv_ref[1, 0, 0]                        # (S, d_k)
    v = qkv_ref[2, 0, 0]                        # (S, d_k)

    # q @ k^T expressed directly as a contraction (no transpose), f32 accumulate.
    s = jax.lax.dot_general(q, k, (((1,), (1,)), ((), ())),
                            preferred_element_type=jnp.float32)      # (tq, S)
    # masked_fill(mask == 0, -1e9), built in-kernel from the raw int mask.
    s = jnp.where(mask_ref[0] == 0, jnp.float32(-1e9), s)

    m = jnp.max(s, axis=-1, keepdims=True)
    e = jnp.exp(s - m)
    p = e * (1.0 / jnp.sum(e, axis=-1, keepdims=True))   # exact softmax (torch parity)
    p_ref[0, 0] = p
    # TODO(synk): dropout on p omitted (eval semantics, dropout == identity).
    o_ref[0, 0] = jnp.dot(p.astype(v.dtype), v,
                          preferred_element_type=jnp.float32).astype(o_ref.dtype)


def mha_attention(qkv, mask, *, tq_target=256):
    """qkv: (3, B, H, S, d_k) bf16 (q pre-scaled via folded W_q).
    mask: (Bm, S, S) int32 with Bm in {1, B}; 0 == masked.
    Returns (out (B, H, S, d_k) bf16, probs (B, H, S, S) f32)."""
    _, B, H, S, d_k = qkv.shape
    bm = mask.shape[0]
    tq = _tile(S, tq_target, 8)
    grid = (B, H, S // tq)

    if bm == 1:    # batch-broadcast mask (e.g. causal): single block reused
        m_map = lambda b, h, qi: (0, qi, 0)
    else:
        m_map = lambda b, h, qi: (b, qi, 0)

    block_bytes = 3 * S * d_k * 2 + tq * S * 4 + tq * d_k * 2 + tq * S * 4
    kernel = functools.partial(_attn_kernel, tq=tq)
    return pl.pallas_call(
        kernel,
        grid=grid,
        in_specs=[
            pl.BlockSpec((3, 1, 1, S, d_k), lambda b, h, qi: (0, b, h, 0, 0)),
            pl.BlockSpec((1, tq, S), m_map),
        ],
        out_specs=(
            pl.BlockSpec((1, 1, tq, d_k), lambda b, h, qi: (b, h, qi, 0)),
            pl.BlockSpec((1, 1, tq, S), lambda b, h, qi: (b, h, qi, 0)),
        ),
        out_shape=(
            jax.ShapeDtypeStruct((B, H, S, d_k), jnp.bfloat16),
            jax.ShapeDtypeStruct((B, H, S, S), jnp.float32),
        ),
        compiler_params=pltpu.CompilerParams(
            dimension_semantics=("parallel", "parallel", "parallel"),
            vmem_limit_bytes=_vmem_limit(block_bytes)),
    )(qkv, mask)


# ----------------------------------------------------------------------------
# Output projection from head-major input: y = sum_h attn[:,h] @ W_o[h] + b_o
# ----------------------------------------------------------------------------
def _out_proj_kernel(x_ref, w_ref, b_ref, o_ref, acc_ref):
    h = pl.program_id(3)

    @pl.when(h == 0)
    def _init():
        acc_ref[...] = jnp.zeros_like(acc_ref)

    acc_ref[...] += jnp.dot(x_ref[0, 0], w_ref[0],
                            preferred_element_type=jnp.float32)

    @pl.when(h == pl.num_programs(3) - 1)
    def _finalize():
        o_ref[0] = (acc_ref[...] + b_ref[0]).astype(o_ref.dtype)


def head_output_projection(x, w, b, *, out_dtype=jnp.float32,
                           ts_target=512, tn_target=512):
    """x: (B, H, S, d_k) bf16; w: (H, d_k, D) bf16; b: (1, 1, D) f32.
    Contracts over (H, d_k); returns (B, S, D) out_dtype — no merge transpose."""
    B, H, S, d_k = x.shape
    D = w.shape[-1]
    ts = _tile(S, ts_target, 8)
    tn = _tile(D, tn_target, 128)
    grid = (B, S // ts, D // tn, H)

    block_bytes = ts * d_k * 2 + d_k * tn * 2 + tn * 4 + ts * tn * 4
    return pl.pallas_call(
        _out_proj_kernel,
        grid=grid,
        in_specs=[
            pl.BlockSpec((1, 1, ts, d_k), lambda b_, i, j, h: (b_, h, i, 0)),
            pl.BlockSpec((1, d_k, tn), lambda b_, i, j, h: (h, 0, j)),
            pl.BlockSpec((1, 1, tn), lambda b_, i, j, h: (0, 0, j)),
        ],
        out_specs=pl.BlockSpec((1, ts, tn), lambda b_, i, j, h: (b_, i, j)),
        out_shape=jax.ShapeDtypeStruct((B, S, D), out_dtype),
        scratch_shapes=[pltpu.VMEM((ts, tn), jnp.float32)],
        compiler_params=pltpu.CompilerParams(
            dimension_semantics=("parallel", "parallel", "parallel", "arbitrary"),
            vmem_limit_bytes=_vmem_limit(block_bytes, ts * tn * 4)),
    )(x, w, b)


# ----------------------------------------------------------------------------
# Module wrapper
# ----------------------------------------------------------------------------
class MultiHeadAttentionBlock:
    def __init__(self, d_model: int, h: int, dropout: float, key) -> None:
        assert d_model % h == 0, "d_model is not divisible by h"
        self.d_model = d_model
        self.h = h
        self.d_k = d_model // h
        self.dropout = dropout          # identity at inference
        self.attention_scores = None

        # deterministic init mirroring torch nn.Linear: U(-1/sqrt(fan_in), +)
        bound = 1.0 / math.sqrt(d_model)
        ks = jax.random.split(key, 8)

        def init_linear(kw, kb):
            w = jax.random.uniform(kw, (d_model, d_model), jnp.float32, -bound, bound)
            b = jax.random.uniform(kb, (d_model,), jnp.float32, -bound, bound)
            return w, b

        wq, bq = init_linear(ks[0], ks[1])
        wk, bk = init_linear(ks[2], ks[3])
        wv, bv = init_linear(ks[4], ks[5])
        wo, bo = init_linear(ks[6], ks[7])

        # Fold 1/sqrt(d_k) into the query projection (free at init).
        scale = 1.0 / math.sqrt(self.d_k)
        wq = wq * scale
        bq = bq * scale

        H, d_k = self.h, self.d_k

        def head_major_w(w):
            # torch (fan_out, fan_in) -> pre-transposed (fan_in, fan_out)
            # -> head-major (H, fan_in, d_k): no run-time transposes or slices.
            return w.T.reshape(d_model, H, d_k).transpose(1, 0, 2)

        def head_major_b(b):
            return b.reshape(H, 1, d_k)

        self.w_qkv = jnp.stack(
            [head_major_w(wq), head_major_w(wk), head_major_w(wv)],
            axis=0).astype(jnp.bfloat16)                                  # (3, H, D, d_k)
        self.b_qkv = jnp.stack(
            [head_major_b(bq), head_major_b(bk), head_major_b(bv)], axis=0)  # (3, H, 1, d_k) f32
        self.w_o = wo.T.reshape(H, d_k, d_model).astype(jnp.bfloat16)        # (H, d_k, D)
        self.b_o = bo.reshape(1, 1, d_model)                                  # (1, 1, D) f32

    def __call__(self, q, k, v, mask):
        B, S, D = q.shape

        # Self-attention (q is k is v): reuse one (1,B,S,D) input for all three
        # projections via the index_map instead of stacking it three times.
        if (q is k) and (k is v):
            x = q.astype(jnp.bfloat16)[None]                       # (1, B, S, D)
        else:
            x = jnp.stack([q, k, v], axis=0).astype(jnp.bfloat16)  # (3, B, S, D)

        qkv = qkv_head_projection(x, self.w_qkv, self.b_qkv)       # (3, B, H, S, d_k)

        # Normalize mask to (Bm, S, S) int32 with Bm in {1, B} (batch-broadcast ok).
        m = jnp.asarray(mask)
        if m.ndim == 4:          # e.g. (B, 1, S, S) / (1, 1, S, S)
            m = m.reshape(-1, S, S)
        elif m.ndim == 2:
            m = m[None]
        assert m.shape[0] in (1, B), "mask batch dim must be 1 or B"
        m = m.astype(jnp.int32)

        attn_out, self.attention_scores = mha_attention(qkv, m)    # (B,H,S,dk), (B,H,S,S)

        # Output projection back to f32; consumes head-major input directly.
        return head_output_projection(attn_out, self.w_o, self.b_o,
                                      out_dtype=jnp.float32)       # (B, S, D)


if __name__ == "__main__":
    B, S, D, H = 2, 8, 32, 4

    root = jax.random.PRNGKey(0)
    k1, k2, k3, kparams = jax.random.split(root, 4)
    q_in = jax.random.normal(k1, (B, S, D), jnp.float32)
    k_in = jax.random.normal(k2, (B, S, D), jnp.float32)
    v_in = jax.random.normal(k3, (B, S, D), jnp.float32)

    # causal mask: 1 = attend, 0 = masked (-1e9 fill in the kernel)
    mask = jnp.tile(jnp.tril(jnp.ones((S, S), jnp.int32))[None], (B, 1, 1))

    block = MultiHeadAttentionBlock(d_model=D, h=H, dropout=0.0, key=kparams)

    # cross-attention path (distinct q/k/v)
    out = block(q_in, k_in, v_in, mask)
    out = jax.block_until_ready(out)
    assert out.shape == (B, S, D)
    assert block.attention_scores.shape == (B, H, S, S)
    assert bool(jnp.all(jnp.isfinite(out)))
    assert bool(jnp.all(jnp.isfinite(block.attention_scores)))
    row_sums = jnp.sum(block.attention_scores, axis=-1)
    assert bool(jnp.all(jnp.abs(row_sums - 1.0) < 1e-3))

    # self-attention path (single shared input, Gin == 1)
    out_self = block(q_in, q_in, q_in, mask)
    out_self = jax.block_until_ready(out_self)
    assert out_self.shape == (B, S, D)
    assert bool(jnp.all(jnp.isfinite(out_self)))

    print("KERNEL_OK")
</pallas_src>

<mosaic_0001>
module attributes {stable_mosaic.version = 11 : i64} {
  func.func @_qkv_proj_kernel(%arg0: i32, %arg1: i32, %arg2: i32, %arg3: i32, %arg4: i32, %arg5: memref<1x1x8x32xbf16, #tpu.memory_space<vmem>>, %arg6: memref<1x1x32x8xbf16, #tpu.memory_space<vmem>>, %arg7: memref<1x1x1x8xf32, #tpu.memory_space<vmem>>, %arg8: memref<1x1x1x8x8xbf16, #tpu.memory_space<vmem>>, %arg9: memref<8x8xf32, #tpu.memory_space<vmem>>) attributes {dimension_semantics = [#tpu.dimension_semantics<parallel>, #tpu.dimension_semantics<parallel>, #tpu.dimension_semantics<parallel>, #tpu.dimension_semantics<parallel>, #tpu.dimension_semantics<arbitrary>], iteration_bounds = array<i64: 3, 2, 1, 4, 1>, scalar_prefetch = 0 : i64, scratch_operands = 1 : i64, tpu.core_type = #tpu.core_type<tc>, window_params = [{transform_indices = @transform_0, window_bounds = array<i64: 1, 1, 8, 32>}, {transform_indices = @transform_1, window_bounds = array<i64: 1, 1, 32, 8>}, {transform_indices = @transform_2, window_bounds = array<i64: 1, 1, 1, 8>}, {transform_indices = @transform_3, window_bounds = array<i64: 1, 1, 1, 8, 8>}]} {
    %c0_i32 = arith.constant 0 : i32
    %0 = arith.cmpi eq, %arg4, %c0_i32 : i32
    %1 = arith.extui %0 : i1 to i32
    %c0_i32_0 = arith.constant 0 : i32
    %2 = arith.cmpi ne, %1, %c0_i32_0 : i32
    scf.if %2 {
      %cst_14 = arith.constant 0.000000e+00 : f32
      %14 = vector.broadcast %cst_14 : f32 to vector<8x8xf32>
      %c0_15 = arith.constant 0 : index
      %c0_16 = arith.constant 0 : index
      %15 = vector.load %arg9[%c0_15, %c0_16] : memref<8x8xf32, #tpu.memory_space<vmem>>, vector<8x8xf32>
      tpu.vector_store %arg9[%c0_15, %c0_16], %14 {strides = array<i32>} : memref<8x8xf32, #tpu.memory_space<vmem>>, vector<8x8xf32>,
    } else {
    }
    %c0 = arith.constant 0 : index
    %c0_1 = arith.constant 0 : index
    %3 = vector.load %arg9[%c0, %c0_1] : memref<8x8xf32, #tpu.memory_space<vmem>>, vector<8x8xf32>
    %c0_2 = arith.constant 0 : index
    %c0_3 = arith.constant 0 : index
    %c0_4 = arith.constant 0 : index
    %c0_5 = arith.constant 0 : index
    %4 = vector.load %arg5[%c0_2, %c0_3, %c0_4, %c0_5] : memref<1x1x8x32xbf16, #tpu.memory_space<vmem>>, vector<1x1x8x32xbf16>
    %5 = vector.shape_cast %4 : vector<1x1x8x32xbf16> to vector<8x32xbf16>
    %c0_6 = arith.constant 0 : index
    %c0_7 = arith.constant 0 : index
    %c0_8 = arith.constant 0 : index
    %c0_9 = arith.constant 0 : index
    %6 = vector.load %arg6[%c0_6, %c0_7, %c0_8, %c0_9] : memref<1x1x32x8xbf16, #tpu.memory_space<vmem>>, vector<1x1x32x8xbf16>
    %7 = vector.shape_cast %6 : vector<1x1x32x8xbf16> to vector<32x8xbf16>
    %cst = arith.constant dense<0.000000e+00> : vector<8x8xf32>
    %8 = tpu.matmul %5, %7, %cst {dimension_numbers = #tpu.dot_dimension_numbers<[1], [0], [0], [1], [0, 0, 1, 1], [], []>} : vector<8x32xbf16>, vector<32x8xbf16>, vector<8x8xf32> -> vector<8x8xf32>
    %9 = arith.addf %3, %8 : vector<8x8xf32>
    %c0_10 = arith.constant 0 : index
    %c0_11 = arith.constant 0 : index
    %10 = vector.load %arg9[%c0_10, %c0_11] : memref<8x8xf32, #tpu.memory_space<vmem>>, vector<8x8xf32>
    tpu.vector_store %arg9[%c0_10, %c0_11], %9 {strides = array<i32>} : memref<8x8xf32, #tpu.memory_space<vmem>>, vector<8x8xf32>,
    %c0_i32_12 = arith.constant 0 : i32
    %11 = arith.cmpi eq, %arg4, %c0_i32_12 : i32
    %12 = arith.extui %11 : i1 to i32
    %c0_i32_13 = arith.constant 0 : i32
    %13 = arith.cmpi ne, %12, %c0_i32_13 : i32
    scf.if %13 {
      %c0_14 = arith.constant 0 : index
      %c0_15 = arith.constant 0 : index
      %14 = vector.load %arg9[%c0_14, %c0_15] : memref<8x8xf32, #tpu.memory_space<vmem>>, vector<8x8xf32>
      %c0_16 = arith.constant 0 : index
      %c0_17 = arith.constant 0 : index
      %c0_18 = arith.constant 0 : index
      %c0_19 = arith.constant 0 : index
      %15 = vector.load %arg7[%c0_16, %c0_17, %c0_18, %c0_19] : memref<1x1x1x8xf32, #tpu.memory_space<vmem>>, vector<1x1x1x8xf32>
      %16 = vector.shape_cast %15 : vector<1x1x1x8xf32> to vector<1x8xf32>
      %17 = vector.broadcast %16 : vector<1x8xf32> to vector<8x8xf32>
      %18 = arith.addf %14, %17 : vector<8x8xf32>
      %19 = arith.truncf %18 : vector<8x8xf32> to vector<8x8xbf16>
      %c0_20 = arith.constant 0 : index
      %c0_21 = arith.constant 0 : index
      %c0_22 = arith.constant 0 : index
      %c0_23 = arith.constant 0 : index
      %c0_24 = arith.constant 0 : index
      %20 = vector.load %arg8[%c0_20, %c0_21, %c0_22, %c0_23, %c0_24] : memref<1x1x1x8x8xbf16, #tpu.memory_space<vmem>>, vector<1x1x1x8x8xbf16>
      %21 = vector.shape_cast %20 : vector<1x1x1x8x8xbf16> to vector<8x8xbf16>
      %22 = vector.shape_cast %19 : vector<8x8xbf16> to vector<1x1x1x8x8xbf16>
      tpu.vector_store %arg8[%c0_20, %c0_21, %c0_22, %c0_23, %c0_24], %22 {strides = array<i32>} : memref<1x1x1x8x8xbf16, #tpu.memory_space<vmem>>, vector<1x1x1x8x8xbf16>,
    } else {
    }
    return
  }
  func.func @transform_0(%arg0: i32, %arg1: i32, %arg2: i32, %arg3: i32, %arg4: i32) -> (i32, i32, i32, i32) {
    %c0_i32 = arith.constant 0 : i32
    return %arg0, %arg1, %arg2, %arg4 : i32, i32, i32, i32
  }
  func.func @transform_1(%arg0: i32, %arg1: i32, %arg2: i32, %arg3: i32, %arg4: i32) -> (i32, i32, i32, i32) {
    %c0_i32 = arith.constant 0 : i32
    %c0_i32_0 = arith.constant 0 : i32
    return %arg0, %arg3, %arg4, %c0_i32 : i32, i32, i32, i32
  }
  func.func @transform_2(%arg0: i32, %arg1: i32, %arg2: i32, %arg3: i32, %arg4: i32) -> (i32, i32, i32, i32) {
    %c0_i32 = arith.constant 0 : i32
    %c0_i32_0 = arith.constant 0 : i32
    %c0_i32_1 = arith.constant 0 : i32
    return %arg0, %arg3, %c0_i32, %c0_i32_0 : i32, i32, i32, i32
  }
  func.func @transform_3(%arg0: i32, %arg1: i32, %arg2: i32, %arg3: i32, %arg4: i32) -> (i32, i32, i32, i32, i32) {
    %c0_i32 = arith.constant 0 : i32
    %c0_i32_0 = arith.constant 0 : i32
    return %arg0, %arg1, %arg3, %arg2, %c0_i32 : i32, i32, i32, i32, i32
  }
}

</mosaic_0001>

<llo_original>
// kernel: tpu_custom_call.1
$region0: #{tpu_custom_call.1}
  #allocation0 [shape = 'u32[]', space=smem, size = 0x4, offset = 0x4, fixed_abs, tag = 'smem constant byte address 0x4 - core index']
  #allocation1 [shape = 'u32[144,128]{1,0:T(1,128)}', space=vmem, size = 0x12000, scoped, tag = 'internal scratch']
  #allocation2 [shape = 'f32[8,8]{1,0:T(8,128)}', space=vmem, size = 0x1000, scoped, tag = 'scratch operand']
  %s0 = inlined_call_operand.vmem [shape: bf16[3,2,8,32], index: 0, kind: input, shape index: {}]
  %s1 = inlined_call_operand.vmem [shape: bf16[3,4,32,8], index: 1, kind: input, shape index: {}]
  %s2 = inlined_call_operand.vmem [shape: f32[3,4,1,8], index: 2, kind: input, shape index: {}]
  %s3 = inlined_call_operand.hbm [shape: bf16[3,2,4,8,8], index: 3, kind: output, shape index: {}]
  %s4 = sld [smem:[#allocation0]]
  $region53: #{tpu_custom_call.1} parent=0
    _
  %s6 = ssub.s32 1, %s4
  %s7 = scalar_select 0, %s6, %s4
  $region1: #{tpu_custom_call.1} parent=0
    #allocation3 [shape = 'u8[4096]{0}', space=vmem, size = 0x1000, scoped, tag = 'output window, operand 0']
    #allocation4 [shape = 's32[2]{0}', space=sflag, size = 0x8, scoped, tag = 'scoped memory for tpu_custom_call.1']
    %8 = vsyncpa [#allocation4], 0
    %s9 = scalar_lea.sflag [#allocation4], 1
    %10 = vsyncpa %s9, 0
    loop: start=0, step=1, limit=26
    $region2: #{tpu_custom_call.1} parent=1 // loop_pre_header
      _
    $region3: #{tpu_custom_call.1} parent=1 // loop_header
      %s12 = sphi 0, %s16
      %p13 = scmp.ge.s32.totalorder %s12, 26
      %s19 = sphi 0, %s52
      %s20 = sphi 0, %s48
      %s21 = sphi 0, %s44
      %s22 = sphi 0, %s40
      %s23 = sphi 0, %s36
      %s24 = sphi 0, %s19
      %s25 = sphi 0, %s20
      %s26 = sphi 0, %s21
      %s27 = sphi 0, %s22
      %s28 = sphi 0, %s23
      %s29 = sphi 0, %s24
      %s30 = sphi 0, %s25
      %s31 = sphi 0, %s26
      %s32 = sphi 0, %s27
      %s33 = sphi 0, %s28
      %s61 = sphi 0, %s63
      %s64 = sphi 0, %s61
      %s65 = sphi 0, %s64
      %s81 = sphi 0, %s65
      %s91 = sphi 0, %s93
      %s94 = sphi 0, %s91
      %s95 = sphi 0, %s94
      %s111 = sphi 0, %s95
      %s119 = sphi 0, %s121
      %s122 = sphi 0, %s119
      %s123 = sphi 0, %s122
      %s139 = sphi 0, %s123
      %s151 = sphi 0, %s153
      %s154 = sphi 0, %s151
      %s155 = sphi 0, %s154
      %s171 = sphi 0, %s155
    $region4: #{tpu_custom_call.1} parent=1 // loop_header_branch
      %15 = sbr.rel (%p13) target = $region8
    $region5: #{tpu_custom_call.1} parent=1 // loop_body
      %s17 = ssub.s32 %s12, 1
      %s18 = ssub.s32 %s12, 2
      %s34 = sadd.s32 1, %s23
      %p35 = scmp.ge.s32.totalorder %s34, 1
      %s36 = scalar_select %p35, 0, %s34
      %s37 = sadd.s32 1, %s22
      %s38 = scalar_select %p35, %s37, %s22
      %p39 = scmp.ge.s32.totalorder %s38, 4
      %s40 = scalar_select %p39, 0, %s38
      %s41 = sadd.s32 1, %s21
      %s42 = scalar_select %p39, %s41, %s21
      %p43 = scmp.ge.s32.totalorder %s42, 1
      %s44 = scalar_select %p43, 0, %s42
      %s45 = sadd.s32 1, %s20
      %s46 = scalar_select %p43, %s45, %s20
      %p47 = scmp.ge.s32.totalorder %s46, 2
      %s48 = scalar_select %p47, 0, %s46
      %s49 = sadd.s32 1, %s19
      %s50 = scalar_select %p47, %s49, %s19
      %p51 = scmp.ge.s32.totalorder %s50, 3
      %s52 = scalar_select %p51, 0, %s50
      %s53 = ssub.s32 %s19, %s52
      %s54 = ssub.s32 %s20, %s48
      %s55 = sor.u32 %s53, %s54
      %s56 = ssub.s32 %s21, %s44
      %s57 = sor.u32 %s55, %s56
      %s58 = ssub.s32 %s23, %s36
      %s59 = sor.u32 %s57, %s58
      %p60 = scmp.eq.s32.totalorder %s59, 0
      %s62 = sadd.s32 %s61, 1
      %s63 = scalar_select %p60, %s61, %s62
      %p66 = pneg %p60
      %p67 = scmp.eq.s32.totalorder %s12, 23
      %p68 = por %p66, %p67
      %p69 = scmp.ne.s32.totalorder %s61, %s64
      %p70 = scmp.eq.s32.totalorder %s12, 0
      %p71 = por %p69, %p70
      %p72 = scmp.ne.s32.totalorder %s61, %s64
      %p73 = scmp.eq.s32.totalorder %s17, 23
      %p74 = por %p72, %p73
      %p75 = scmp.ne.s32.totalorder %s64, %s65
      %p76 = scmp.eq.s32.totalorder %s17, 0
      %p77 = por %p75, %p76
      %p78 = scmp.ne.s32.totalorder %s64, %s65
      %p79 = scmp.eq.s32.totalorder %s18, 23
      %p80 = por %p78, %p79
      %p82 = scmp.ne.s32.totalorder %s65, %s81
      %p83 = scmp.eq.s32.totalorder %s18, 0
      %p84 = por %p82, %p83
      %s85 = ssub.s32 %s19, %s52
      %s86 = ssub.s32 %s22, %s40
      %s87 = sor.u32 %s85, %s86
      %s88 = ssub.s32 %s23, %s36
      %s89 = sor.u32 %s87, %s88
      %p90 = scmp.eq.s32.totalorder %s89, 0
      %s92 = sadd.s32 %s91, 1
      %s93 = scalar_select %p90, %s91, %s92
      %p96 = pneg %p90
      %p97 = scmp.eq.s32.totalorder %s12, 23
      %p98 = por %p96, %p97
      %p99 = scmp.ne.s32.totalorder %s91, %s94
      %p100 = scmp.eq.s32.totalorder %s12, 0
      %p101 = por %p99, %p100
      %p102 = scmp.ne.s32.totalorder %s91, %s94
      %p103 = scmp.eq.s32.totalorder %s17, 23
      %p104 = por %p102, %p103
      %p105 = scmp.ne.s32.totalorder %s94, %s95
      %p106 = scmp.eq.s32.totalorder %s17, 0
      %p107 = por %p105, %p106
      %p108 = scmp.ne.s32.totalorder %s94, %s95
      %p109 = scmp.eq.s32.totalorder %s18, 23
      %p110 = por %p108, %p109
      %p112 = scmp.ne.s32.totalorder %s95, %s111
      %p113 = scmp.eq.s32.totalorder %s18, 0
      %p114 = por %p112, %p113
      %s115 = ssub.s32 %s19, %s52
      %s116 = ssub.s32 %s22, %s40
      %s117 = sor.u32 %s115, %s116
      %p118 = scmp.eq.s32.totalorder %s117, 0
      %s120 = sadd.s32 %s119, 1
      %s121 = scalar_select %p118, %s119, %s120
      %p124 = pneg %p118
      %p125 = scmp.eq.s32.totalorder %s12, 23
      %p126 = por %p124, %p125
      %p127 = scmp.ne.s32.totalorder %s119, %s122
      %p128 = scmp.eq.s32.totalorder %s12, 0
      %p129 = por %p127, %p128
      %p130 = scmp.ne.s32.totalorder %s119, %s122
      %p131 = scmp.eq.s32.totalorder %s17, 23
      %p132 = por %p130, %p131
      %p133 = scmp.ne.s32.totalorder %s122, %s123
      %p134 = scmp.eq.s32.totalorder %s17, 0
      %p135 = por %p133, %p134
      %p136 = scmp.ne.s32.totalorder %s122, %s123
      %p137 = scmp.eq.s32.totalorder %s18, 23
      %p138 = por %p136, %p137
      %p140 = scmp.ne.s32.totalorder %s123, %s139
      %p141 = scmp.eq.s32.totalorder %s18, 0
      %p142 = por %p140, %p141
      %s143 = ssub.s32 %s19, %s52
      %s144 = ssub.s32 %s20, %s48
      %s145 = sor.u32 %s143, %s144
      %s146 = ssub.s32 %s22, %s40
      %s147 = sor.u32 %s145, %s146
      %s148 = ssub.s32 %s21, %s44
      %s149 = sor.u32 %s147, %s148
      %p150 = scmp.eq.s32.totalorder %s149, 0
      %s152 = sadd.s32 %s151, 1
      %s153 = scalar_select %p150, %s151, %s152
      %p156 = pneg %p150
      %p157 = scmp.eq.s32.totalorder %s12, 23
      %p158 = por %p156, %p157
      %p159 = scmp.ne.s32.totalorder %s151, %s154
      %p160 = scmp.eq.s32.totalorder %s12, 0
      %p161 = por %p159, %p160
      %p162 = scmp.ne.s32.totalorder %s151, %s154
      %p163 = scmp.eq.s32.totalorder %s17, 23
      %p164 = por %p162, %p163
      %p165 = scmp.ne.s32.totalorder %s154, %s155
      %p166 = scmp.eq.s32.totalorder %s17, 0
      %p167 = por %p165, %p166
      %p168 = scmp.ne.s32.totalorder %s154, %s155
      %p169 = scmp.eq.s32.totalorder %s18, 23
      %p170 = por %p168, %p169
      %p172 = scmp.ne.s32.totalorder %s155, %s171
      %p173 = scmp.eq.s32.totalorder %s18, 0
      %p174 = por %p172, %p173
      %p175 = scmp.le.s32.totalorder 1, %s12
      %p176 = scmp.lt.s32.totalorder %s12, 25
      %p177 = pnand %p175, %p176
      %p178 = pneg %p177
      // Predicated region
      $region9: #{tpu_custom_call.1} parent=5 // pred_check
        _
      $region10: #{tpu_custom_call.1} parent=5 // pred_check_branch
        %180 = sbr.rel (%p177) target = $region12
      $region11: #{tpu_custom_call.1} parent=5 // pred_region
        %s181 = ssub.s32 %s12, 1
      $region12: #{tpu_custom_call.1} parent=5 // pred_fallthru
        _
      %p182 = scmp.lt.s32.totalorder %s12, 24
      // Predicated region
      $region13: #{tpu_custom_call.1} parent=5 // pred_check
        %p183 = pneg %p182
      $region14: #{tpu_custom_call.1} parent=5 // pred_check_branch
        %185 = sbr.rel (%p183) target = $region16
      $region15: #{tpu_custom_call.1} parent=5 // pred_region
        // Predicated region
        $region17: #{tpu_custom_call.1} parent=15 // pred_check
          %p186 = pneg %p71
        $region18: #{tpu_custom_call.1} parent=15 // pred_check_branch
          %188 = sbr.rel (%p186) target = $region20
        $region19: #{tpu_custom_call.1} parent=15 // pred_region
          %p189 = scmp.lt.s32.totalorder %s19, 2
          %s190 = scalar_select %p189, %s19, 2
          %p191 = scmp.lt.s32.totalorder %s20, 1
          %s192 = scalar_select %p191, %s20, 1
          %p193 = scmp.lt.s32.totalorder %s21, 0
          %s194 = scalar_select %p193, %s21, 0
          %p195 = scmp.lt.s32.totalorder %s23, 0
          %s196 = scalar_select %p195, %s23, 0
          %s197 = sadd.s32 %s196, %s194
          %s198 = sadd.s32 %s197, %s192
          %s199 = smul.addr %s190, 2
          %s200 = sadd.s32 %s198, %s199
          %s201 = smul.addr %s200, 4
          %s202 = scalar_lea.vmem %s0, %s201
        $region20: #{tpu_custom_call.1} parent=15 // pred_fallthru
          _
        // Predicated region
        $region21: #{tpu_custom_call.1} parent=15 // pred_check
          %p203 = pneg %p101
        $region22: #{tpu_custom_call.1} parent=15 // pred_check_branch
          %205 = sbr.rel (%p203) target = $region24
        $region23: #{tpu_custom_call.1} parent=15 // pred_region
          %s206 = smul.u32 4, %s23
          %p207 = scmp.lt.s32.totalorder %s19, 2
          %s208 = scalar_select %p207, %s19, 2
          %p209 = scmp.lt.s32.totalorder %s22, 3
          %s210 = scalar_select %p209, %s22, 3
          %p211 = scmp.lt.s32.totalorder %s206, 3
          %s212 = scalar_select %p211, %s206, 3
          %s213 = smul.addr %s210, 4
          %s214 = sadd.s32 %s212, %s213
          %s215 = smul.addr %s208, 16
          %s216 = sadd.s32 %s214, %s215
          %s217 = smul.addr %s216, 4
          %s218 = scalar_lea.vmem %s1, %s217
          %s219 = smul.u32 4, %s23
        $region24: #{tpu_custom_call.1} parent=15 // pred_fallthru
          _
        // Predicated region
        $region25: #{tpu_custom_call.1} parent=15 // pred_check
          %p220 = pneg %p129
        $region26: #{tpu_custom_call.1} parent=15 // pred_check_branch
          %222 = sbr.rel (%p220) target = $region28
        $region27: #{tpu_custom_call.1} parent=15 // pred_region
          %p223 = scmp.lt.s32.totalorder %s19, 2
          %s224 = scalar_select %p223, %s19, 2
          %p225 = scmp.lt.s32.totalorder %s22, 3
          %s226 = scalar_select %p225, %s22, 3
          %s227 = smul.addr %s224, 4
          %s228 = sadd.s32 %s226, %s227
          %s229 = scalar_lea.vmem %s2, %s228
        $region28: #{tpu_custom_call.1} parent=15 // pred_fallthru
          _
      $region16: #{tpu_custom_call.1} parent=5 // pred_fallthru
        _
      %p230 = scmp.le.s32.totalorder 1, %s12
      %p231 = scmp.lt.s32.totalorder %s12, 25
      %p232 = pnand %p230, %p231
      %p233 = pneg %p232
      // Predicated region
      $region29: #{tpu_custom_call.1} parent=5 // pred_check
        _
      $region30: #{tpu_custom_call.1} parent=5 // pred_check_branch
        %235 = sbr.rel (%p232) target = $region32
      $region31: #{tpu_custom_call.1} parent=5 // pred_region
        %s236 = ssub.s32 %s12, 1
        %p237 = scmp.lt.s32.totalorder %s24, 2
        %s238 = scalar_select %p237, %s24, 2
        %p239 = scmp.lt.s32.totalorder %s25, 1
        %s240 = scalar_select %p239, %s25, 1
        %p241 = scmp.lt.s32.totalorder %s26, 0
        %s242 = scalar_select %p241, %s26, 0
        %p243 = scmp.lt.s32.totalorder %s28, 0
        %s244 = scalar_select %p243, %s28, 0
        %s245 = sadd.s32 %s244, %s242
        %s246 = sadd.s32 %s245, %s240
        %s247 = smul.addr %s238, 2
        %s248 = sadd.s32 %s246, %s247
        %s249 = smul.addr %s248, 4
        %s250 = scalar_lea.vmem %s0, %s249
        %p251 = pneg %p77
        %p252 = pneg %p74
        %s253 = smul.u32 4, %s28
        %p254 = scmp.lt.s32.totalorder %s24, 2
        %s255 = scalar_select %p254, %s24, 2
        %p256 = scmp.lt.s32.totalorder %s27, 3
        %s257 = scalar_select %p256, %s27, 3
        %p258 = scmp.lt.s32.totalorder %s253, 3
        %s259 = scalar_select %p258, %s253, 3
        %s260 = smul.addr %s257, 4
        %s261 = sadd.s32 %s259, %s260
        %s262 = smul.addr %s255, 16
        %s263 = sadd.s32 %s261, %s262
        %s264 = smul.addr %s263, 4
        %s265 = scalar_lea.vmem %s1, %s264
        %p266 = pneg %p107
        %p267 = pneg %p104
        %p268 = scmp.lt.s32.totalorder %s24, 2
        %s269 = scalar_select %p268, %s24, 2
        %p270 = scmp.lt.s32.totalorder %s27, 3
        %s271 = scalar_select %p270, %s27, 3
        %s272 = smul.addr %s269, 4
        %s273 = sadd.s32 %s271, %s272
        %s274 = scalar_lea.vmem %s2, %s273
        %p275 = pneg %p135
        %p276 = pneg %p132
        %p277 = pneg %p167
        %p278 = pneg %p164
        %s279 = sand.u32 %s154, 1
        %s280 = scalar_lea.sflag [#allocation4], %s279
        %s281 = sand.u32 %s154, 1
        %s282 = smul.addr %s281, 4
        %s283 = scalar_lea.vmem [#allocation3], %s282
        %p284 = scmp.lt.s32.totalorder %s24, 2
        %s285 = scalar_select %p284, %s24, 2
        %p286 = scmp.lt.s32.totalorder %s25, 1
        %s287 = scalar_select %p286, %s25, 1
        %p288 = scmp.lt.s32.totalorder %s26, 0
        %s289 = scalar_select %p288, %s26, 0
        %p290 = scmp.lt.s32.totalorder %s28, 0
        %s291 = scalar_select %p290, %s28, 0
        %s292 = sadd.s32 %s291, %s289
        %s293 = sadd.s32 %s292, %s287
        %s294 = smul.addr %s285, 2
        %s295 = sadd.s32 %s293, %s294
        %s296 = smul.addr %s295, 4
        %s297 = scalar_lea.vmem %s0, %s296
        %s298 = smul.u32 4, %s28
        %p299 = scmp.lt.s32.totalorder %s24, 2
        %s300 = scalar_select %p299, %s24, 2
        %p301 = scmp.lt.s32.totalorder %s27, 3
        %s302 = scalar_select %p301, %s27, 3
        %p303 = scmp.lt.s32.totalorder %s298, 3
        %s304 = scalar_select %p303, %s298, 3
        %s305 = smul.addr %s302, 4
        %s306 = sadd.s32 %s304, %s305
        %s307 = smul.addr %s300, 16
        %s308 = sadd.s32 %s306, %s307
        %s309 = smul.addr %s308, 4
        %s310 = scalar_lea.vmem %s1, %s309
        %s311 = smul.u32 4, %s28
        %p312 = scmp.lt.s32.totalorder %s24, 2
        %s313 = scalar_select %p312, %s24, 2
        %p314 = scmp.lt.s32.totalorder %s27, 3
        %s315 = scalar_select %p314, %s27, 3
        %s316 = smul.addr %s313, 4
        %s317 = sadd.s32 %s315, %s316
        %s318 = scalar_lea.vmem %s2, %s317
        %p320 = scmp.eq.s32.totalorder %s28, 0
        // Predicated region
        $region33: #{tpu_custom_call.1} parent=31 // pred_check
          %p321 = pneg %p320
        $region34: #{tpu_custom_call.1} parent=31 // pred_check_branch
          %323 = sbr.rel (%p321) target = $region36
        $region35: #{tpu_custom_call.1} parent=31 // pred_region
          %vm324 = vcmask 64512
          %325 = vst.msk [vmem:[#allocation2] sm:$0xff] %vm324, 0.0
        $region36: #{tpu_custom_call.1} parent=31 // pred_fallthru
          _
        %v326 = vld [vmem:[#allocation2] sm:$0xff]
        %v327 = vld [vmem:[%s297] sm:$0xf]
        %v328 = vld [vmem:[%s310] sm:$0xf]
        %v329 = vld [vmem:[%s310 + $0x4] sm:$0xf]
        %v330 = vld [vmem:[%s310 + $0x8] sm:$0xf]
        %v331 = vld [vmem:[%s310 + $0xc] sm:$0xf]
        %v336 = vunpack.c.l.b16 %v328
        %v337 = vunpack.c.l.b16 %v329
        %v338 = vunpack.c.l.b16 %v330
        %v339 = vunpack.c.l.b16 %v331
        %v340 = vpack.c.b16 %v337, %v336
        %v341 = vpack.c.b16 %v339, %v338
        %vm344 = vcmask 261120
        %v346 = vsel %vm344, %v327, 0
        %348 = vmatprep.subr.bf16.mxu0 0
        %349 = vmatpush1.bf16.msra.mxu0 %v340
        %350 = vmatprep.subr.bf16.mxu0 0
        %351 = vmatpush1.bf16.msra.mxu0 %v341
        %352 = vmatprep.subr.bf16.mxu0 0
        %353 = vmatpush1.bf16.msra.mxu0 0
        %354 = vmatprep.subr.bf16.mxu0 0
        %355 = vmatpush1.bf16.msra.mxu0 0
        %356 = vmatprep.subr.bf16.mxu0 0
        %357 = vmatpush1.bf16.msra.mxu0 0
        %358 = vmatprep.subr.bf16.mxu0 0
        %359 = vmatpush1.bf16.msra.mxu0 0
        %360 = vmatprep.subr.bf16.mxu0 0
        %361 = vmatpush1.bf16.msra.mxu0 0
        %362 = vmatprep.subr.bf16.mxu0 0
        %363 = vmatpush1.bf16.msra.mxu0 0
        %364 = vmatprep.subr.bf16.mxu0 0
        %365 = vmatpush1.bf16.msra.mxu0 0
        %366 = vmatprep.subr.bf16.mxu0 0
        %367 = vmatpush1.bf16.msra.mxu0 0
        %368 = vmatprep.subr.bf16.mxu0 0
        %369 = vmatpush1.bf16.msra.mxu0 0
        %370 = vmatprep.subr.bf16.mxu0 0
        %371 = vmatpush1.bf16.msra.mxu0 0
        %372 = vmatprep.subr.bf16.mxu0 0
        %373 = vmatpush1.bf16.msra.mxu0 0
        %374 = vmatprep.subr.bf16.mxu0 0
        %375 = vmatpush1.bf16.msra.mxu0 0
        %376 = vmatprep.subr.bf16.mxu0 0
        %377 = vmatpush1.bf16.msra.mxu0 0
        %378 = vmatprep.subr.bf16.mxu0 0
        %379 = vmatpush1.bf16.msra.mxu0 0
        %380 = vmatprep.mubr.bf16.mxu0 0
        %381 = vmatmul.mubr.bf16.gmra.mrb[0].mxu0 %v346
        %v382 = vpop.f32.mrb[0].mxu0
        %v383 = vadd.f32 0.0, %v382
        %v384 = vpop.f32.mrb[0].mxu0
        %v385 = vpop.f32.mrb[0].mxu0
        %v386 = vpop.f32.mrb[0].mxu0
        %387 = vdwg.mxu0
        %v388 = vadd.f32 %v326, %v383
        %vm389 = vcmask 64512
        %390 = vst.msk [vmem:[#allocation2] sm:$0xff] %vm389, %v388
        // Predicated region
        $region37: #{tpu_custom_call.1} parent=31 // pred_check
          %p391 = pneg %p320
        $region38: #{tpu_custom_call.1} parent=31 // pred_check_branch
          %393 = sbr.rel (%p391) target = $region40
        $region39: #{tpu_custom_call.1} parent=31 // pred_region
          %v394 = vld [vmem:[#allocation2] sm:$0xff]
          %v395 = vld [vmem:[%s318] sm:$0x1]
          %v397 = vlaneseq
          %v398 = vshrl.u32 %v397, 7
          %v399 = vsub.s32 0, %v398
          %v400 = vrot.slane %v395, %v399
          %v402 = vadd.f32 %v394, %v400
          %v403 = vpack.c.bf16 %v402, %v402
          %vm404 = vcmask 60416
          %405 = vst.msk [vmem:[%s283] sm:$0xf] %vm404, %v403
        $region40: #{tpu_custom_call.1} parent=31 // pred_fallthru
          _
        %s406 = sand.u32 %s154, 1
        %s407 = scalar_lea.sflag [#allocation4], %s406
        %s408 = sand.u32 %s154, 1
        %s409 = smul.addr %s408, 4
        %s410 = scalar_lea.vmem [#allocation3], %s409
        // Predicated region
        $region41: #{tpu_custom_call.1} parent=31 // pred_check
          %p411 = pneg %p164
        $region42: #{tpu_custom_call.1} parent=31 // pred_check_branch
          %413 = sbr.rel (%p411) target = $region44
        $region43: #{tpu_custom_call.1} parent=31 // pred_region
          %s415 = ssub.s32 64, 64
          %416 = vsyncadd %s407, %s415
          %s417 = sadd.s32 %s26, %s27
          %s418 = smul.addr %s25, 4
          %s419 = sadd.s32 %s417, %s418
          %s420 = smul.addr %s24, 8
          %s421 = sadd.s32 %s419, %s420
          %s422 = smul.addr %s421, 64
          %s423 = scalar_lea.hbm %s3, %s422
          %s425 = sshll.u32 %s410, 4
          %s426 = int_to_ptr.vmem [resolvable:$true] %s425
          %428 = dma.vmem_to_hbm [thread:$0]  %s426, 64, %s423, %s407
        $region44: #{tpu_custom_call.1} parent=31 // pred_fallthru
          _
      $region32: #{tpu_custom_call.1} parent=5 // pred_fallthru
        _
      %p429 = scmp.le.s32.totalorder 2, %s12
      // Predicated region
      $region45: #{tpu_custom_call.1} parent=5 // pred_check
        %p430 = pneg %p429
      $region46: #{tpu_custom_call.1} parent=5 // pred_check_branch
        %432 = sbr.rel (%p430) target = $region48
      $region47: #{tpu_custom_call.1} parent=5 // pred_region
        %s433 = ssub.s32 %s12, 2
        // Predicated region
        $region49: #{tpu_custom_call.1} parent=47 // pred_check
          %p434 = pneg %p170
        $region50: #{tpu_custom_call.1} parent=47 // pred_check_branch
          %436 = sbr.rel (%p434) target = $region52
        $region51: #{tpu_custom_call.1} parent=47 // pred_region
          %s437 = sand.u32 %s155, 1
          %s438 = scalar_lea.sflag [#allocation4], %s437
          %s439 = sand.u32 %s155, 1
          %s440 = smul.addr %s439, 4
          %s441 = scalar_lea.vmem [#allocation3], %s440
          %442 = dma.done %s438, 64
        $region52: #{tpu_custom_call.1} parent=47 // pred_fallthru
          _
      $region48: #{tpu_custom_call.1} parent=5 // pred_fallthru
        _
    $region6: #{tpu_custom_call.1} parent=1 // loop_footer
      %s16 = sadd.s32 1, %s12
    $region7: #{tpu_custom_call.1} parent=1 // loop_footer_branch
      %11 = sbr.rel target = $region3
    $region8: #{tpu_custom_call.1} parent=1 // loop_exit
      _
    %443 = vsyncpa [#allocation4], 1
    %s444 = scalar_lea.sflag [#allocation4], 1
    %445 = vsyncpa %s444, 1

</llo_original>
